<compile_context>
chip_gen: v7x
topology: tpu7x:2x2x1
jax: 0.10.0
libtpu: 0.0.40
codegen_flags: <defaults>
</compile_context>

<pallas_src>
import jax
import jax.numpy as jnp
from jax.experimental import pallas as pl
from jax.experimental.pallas import tpu as pltpu

EPS = 1e-6


def rmsnorm_kernel(x_ref, w_ref, o_ref):
    # x_ref: (tm, H), w_ref: (1, H), o_ref: (tm, H)
    x = x_ref[...].astype(jnp.float32)          # single read+cast (reused below)
    var = jnp.mean(x * x, axis=-1, keepdims=True)
    inv = jax.lax.rsqrt(var + EPS)
    w = w_ref[...].astype(jnp.float32)
    o_ref[...] = (w * (x * inv)).astype(o_ref.dtype)


def _sublane_align(dtype):
    # fp32 -> 8, bf16/f16 -> 16, int8/fp8 -> 32 (packed-sublane tile multiples)
    itemsize = jnp.dtype(dtype).itemsize
    return max(8, 32 // max(itemsize, 1))


def rmsnorm(x, weight, *, block_rows=None, out_dtype=None):
    """x: (S, H) any float dtype; weight: (H,).

    Matches RefRMSNorm.forward: output dtype follows the weight dtype
    (fp32 weight -> fp32 output; half/bf16 weight -> half/bf16 output).
    `out_dtype` can be overridden explicitly (e.g. bf16 out with fp32 weight
    to halve write traffic) — that intentionally diverges from torch promotion.
    """
    S, H = x.shape
    if out_dtype is None:
        out_dtype = weight.dtype

    in_bytes = jnp.dtype(x.dtype).itemsize
    out_bytes = jnp.dtype(out_dtype).itemsize
    align = max(_sublane_align(x.dtype), _sublane_align(out_dtype))

    if block_rows is None:
        # Biggest row tile whose double-buffered in+out working set fits a
        # conservative 32 MiB tile budget (safe on v7x's 64 MiB/TC VMEM as
        # well as 128 MiB on v5e/v6e). Beyond ~512-1024 rows the HBM roofline
        # is already ~86% saturated, so cap there.
        tile_budget = 32 * 1024 * 1024
        bytes_per_row = H * (in_bytes + out_bytes)
        block_rows = max(align, tile_budget // (2 * bytes_per_row))
        block_rows = min(block_rows, 1024)
        block_rows = (block_rows // align) * align
        if S <= block_rows:
            if S >= 4 * align:
                # Split into >=2 grid steps so both v7x TensorCores get work.
                block_rows = -(-((S + 1) // 2) // align) * align
            else:
                block_rows = S          # full-extent block (legal for any S)

    grid = (pl.cdiv(S, block_rows),)

    # Size the scoped VMEM limit to the actual double-buffered working set
    # (output tile may be wider dtype than input), with headroom; cap at
    # 64 MiB so the limit is valid on every generation including v7x.
    in_tile = block_rows * H * in_bytes
    out_tile = block_rows * H * out_bytes
    w_tile = H * jnp.dtype(weight.dtype).itemsize
    vmem_bytes = 2 * (in_tile + out_tile + w_tile) + (4 << 20)
    vmem_bytes = int(min(max(vmem_bytes, 16 << 20), 64 << 20))

    w2d = weight.reshape(1, H)
    return pl.pallas_call(
        rmsnorm_kernel,
        out_shape=jax.ShapeDtypeStruct((S, H), out_dtype),
        grid_spec=pltpu.PrefetchScalarGridSpec(
            num_scalar_prefetch=0,
            grid=grid,
            in_specs=[
                pl.BlockSpec((block_rows, H), lambda i: (i, 0)),
                pl.BlockSpec((1, H), lambda i: (0, 0)),
            ],
            out_specs=pl.BlockSpec((block_rows, H), lambda i: (i, 0)),
        ),
        compiler_params=pltpu.CompilerParams(
            dimension_semantics=("parallel",),
            vmem_limit_bytes=vmem_bytes,
        ),
    )(x, w2d)


def rmsnorm_ref(x, weight):
    xf = x.astype(jnp.float32)
    var = jnp.mean(xf * xf, axis=-1, keepdims=True)
    normed = xf * jax.lax.rsqrt(var + EPS)
    out = weight.astype(jnp.float32) * normed
    return out.astype(weight.dtype)


if __name__ == "__main__":
    key = jax.random.PRNGKey(0)
    k_x, k_w = jax.random.split(key)

    S, H = 8, 32  # small shapes: seq=8, hidden=32
    x = jax.random.normal(k_x, (S, H), dtype=jnp.float32)
    # deterministic weight init matching torch's uniform_(-0.001, 0.001)
    weight = jax.random.uniform(k_w, (H,), dtype=jnp.float32,
                                minval=-0.001, maxval=0.001)

    out = rmsnorm(x, weight)
    jax.block_until_ready(out)

    ref = rmsnorm_ref(x, weight)
    assert out.shape == (S, H) and out.dtype == jnp.float32
    assert jnp.allclose(out, ref, atol=1e-6, rtol=1e-6), "mismatch vs reference"
    print("KERNEL_OK")
</pallas_src>

<mosaic_0001>
module attributes {stable_mosaic.version = 11 : i64} {
  func.func @rmsnorm_kernel(%arg0: i32, %arg1: memref<8x32xf32, #tpu.memory_space<vmem>>, %arg2: memref<1x32xf32, #tpu.memory_space<vmem>>, %arg3: memref<8x32xf32, #tpu.memory_space<vmem>>) attributes {dimension_semantics = [#tpu.dimension_semantics<parallel>], iteration_bounds = array<i64: 1>, scalar_prefetch = 0 : i64, scratch_operands = 0 : i64, tpu.core_type = #tpu.core_type<tc>, window_params = [{transform_indices = @transform_0, window_bounds = array<i64: 8, 32>}, {pipeline_mode = #tpu.pipeline_mode<synchronous>, transform_indices = @transform_1, window_bounds = array<i64: 1, 32>}, {transform_indices = @transform_2, window_bounds = array<i64: 8, 32>}]} {
    %c0 = arith.constant 0 : index
    %c0_0 = arith.constant 0 : index
    %0 = vector.load %arg1[%c0, %c0_0] : memref<8x32xf32, #tpu.memory_space<vmem>>, vector<8x32xf32>
    %1 = arith.mulf %0, %0 : vector<8x32xf32>
    %cst = arith.constant dense<0.000000e+00> : vector<8xf32>
    %2 = vector.multi_reduction <add>, %1, %cst [1] : vector<8x32xf32> to vector<8xf32>
    %3 = vector.shape_cast %2 : vector<8xf32> to vector<8x1xf32>
    %cst_1 = arith.constant 3.200000e+01 : f32
    %4 = vector.broadcast %cst_1 : f32 to vector<8x1xf32>
    %5 = arith.divf %3, %4 : vector<8x1xf32>
    %cst_2 = arith.constant 9.99999997E-7 : f32
    %6 = vector.broadcast %cst_2 : f32 to vector<8x1xf32>
    %7 = arith.addf %5, %6 : vector<8x1xf32>
    %8 = math.rsqrt %7 : vector<8x1xf32>
    %c0_3 = arith.constant 0 : index
    %c0_4 = arith.constant 0 : index
    %9 = vector.load %arg2[%c0_3, %c0_4] : memref<1x32xf32, #tpu.memory_space<vmem>>, vector<1x32xf32>
    %10 = vector.broadcast %8 : vector<8x1xf32> to vector<8x32xf32>
    %11 = arith.mulf %0, %10 : vector<8x32xf32>
    %12 = vector.broadcast %9 : vector<1x32xf32> to vector<8x32xf32>
    %13 = arith.mulf %12, %11 : vector<8x32xf32>
    %c0_5 = arith.constant 0 : index
    %c0_6 = arith.constant 0 : index
    %14 = vector.load %arg3[%c0_5, %c0_6] : memref<8x32xf32, #tpu.memory_space<vmem>>, vector<8x32xf32>
    tpu.vector_store %arg3[%c0_5, %c0_6], %13 {strides = array<i32>} : memref<8x32xf32, #tpu.memory_space<vmem>>, vector<8x32xf32>,
    return
  }
  func.func @transform_0(%arg0: i32) -> (i32, i32) {
    %c0_i32 = arith.constant 0 : i32
    %c0_i32_0 = arith.constant 0 : i32
    return %arg0, %c0_i32 : i32, i32
  }
  func.func @transform_1(%arg0: i32) -> (i32, i32) {
    %c0_i32 = arith.constant 0 : i32
    %c0_i32_0 = arith.constant 0 : i32
    %c0_i32_1 = arith.constant 0 : i32
    return %c0_i32, %c0_i32_0 : i32, i32
  }
  func.func @transform_2(%arg0: i32) -> (i32, i32) {
    %c0_i32 = arith.constant 0 : i32
    %c0_i32_0 = arith.constant 0 : i32
    return %arg0, %c0_i32 : i32, i32
  }
}

</mosaic_0001>

<llo_original>
// kernel: tpu_custom_call.1
$region0: #{tpu_custom_call.1}
  #allocation0 [shape = 'u32[]', space=smem, size = 0x4, offset = 0x4, fixed_abs, tag = 'smem constant byte address 0x4 - core index']
  #allocation1 [shape = 'u32[144,128]{1,0:T(1,128)}', space=vmem, size = 0x12000, scoped, tag = 'internal scratch']
  %s0 = inlined_call_operand.hbm [shape: f32[8,32], index: 0, kind: input, shape index: {}]
  %s1 = inlined_call_operand.vmem [shape: f32[1,32], index: 1, kind: input, shape index: {}]
  %s2 = inlined_call_operand.hbm [shape: f32[8,32], index: 2, kind: output, shape index: {}]
  %s3 = sld [smem:[#allocation0]]
  $region22: #{tpu_custom_call.1} parent=0
    _
  %s5 = ssub.s32 1, %s3
  %s6 = scalar_select 0, %s5, %s3
  $region1: #{tpu_custom_call.1} parent=0
    #allocation2 [shape = 'u8[4096]{0}', space=vmem, size = 0x1000, scoped, tag = 'input window, operand 0, single buffered']
    #allocation3 [shape = 's32[1]{0}', space=sflag, size = 0x4, scoped, tag = 'scoped memory for tpu_custom_call.1']
    #allocation4 [shape = 's32[1]{0}', space=sflag, size = 0x4, scoped, tag = 'scoped memory for tpu_custom_call.1']
    #allocation5 [shape = 'u8[4096]{0}', space=vmem, size = 0x1000, scoped, tag = 'output window, operand 0, single buffered']
    %7 = vsyncpa [#allocation3], 0
    %8 = vsyncpa [#allocation4], 0
    // Predicated region
    $region2: #{tpu_custom_call.1} parent=1 // pred_check
      _
    $region3: #{tpu_custom_call.1} parent=1 // pred_check_branch
      %10 = sbr.rel (0) target = $region5
    $region4: #{tpu_custom_call.1} parent=1 // pred_region
      %s12 = ssub.s32 128, 128
      %13 = vsyncadd [#allocation3], %s12
      %s15 = sshll.u32 [#allocation2], 4
      %s16 = int_to_ptr.vmem [resolvable:$true] %s15
      %18 = dma.hbm_to_vmem [thread:$0]  %s0, 128, %s16, [#allocation3]
    $region5: #{tpu_custom_call.1} parent=1 // pred_fallthru
      _
    // Predicated region
    $region6: #{tpu_custom_call.1} parent=1 // pred_check
      _
    $region7: #{tpu_custom_call.1} parent=1 // pred_check_branch
      %20 = sbr.rel (0) target = $region9
    $region8: #{tpu_custom_call.1} parent=1 // pred_region
      _
    $region9: #{tpu_custom_call.1} parent=1 // pred_fallthru
      _
    // Predicated region
    $region10: #{tpu_custom_call.1} parent=1 // pred_check
      _
    $region11: #{tpu_custom_call.1} parent=1 // pred_check_branch
      %22 = sbr.rel (0) target = $region13
    $region12: #{tpu_custom_call.1} parent=1 // pred_region
      %23 = dma.done [#allocation3], 128
    $region13: #{tpu_custom_call.1} parent=1 // pred_fallthru
      _
    %v24 = vld [vmem:[#allocation2] sm:$0xff]
    %v25 = vmul.f32 %v24, %v24
    %vm26 = vcmask 261120
    %v27 = vsel %vm26, %v25, 0.0
    %28 = vadd.xlane.f32.xlu0 %v27
    %v29 = vpop.xlane.xlu0 %28
    %v30 = vrcp.pop 32.0
    %v31 = vmul.f32 %v29, %v30
    %v32 = vadd.f32 %v31, 1e-06
    %v33 = vrsqrt.pop %v32
    %v34 = vld [vmem:[%s1] sm:$0x1]
    %v35 = vmul.f32 %v24, %v33
    %v37 = vlaneseq
    %v38 = vshrl.u32 %v37, 7
    %v39 = vsub.s32 0, %v38
    %v40 = vrot.slane %v34, %v39
    %v42 = vmul.f32 %v40, %v35
    %43 = vst.msk [vmem:[#allocation5] sm:$0xff] %vm26, %v42
    // Predicated region
    $region14: #{tpu_custom_call.1} parent=1 // pred_check
      _
    $region15: #{tpu_custom_call.1} parent=1 // pred_check_branch
      %45 = sbr.rel (0) target = $region17
    $region16: #{tpu_custom_call.1} parent=1 // pred_region
      %s47 = ssub.s32 128, 128
      %48 = vsyncadd [#allocation4], %s47
      %s50 = sshll.u32 [#allocation5], 4
      %s51 = int_to_ptr.vmem [resolvable:$true] %s50
      %53 = dma.vmem_to_hbm [thread:$0]  %s51, 128, %s2, [#allocation4]
    $region17: #{tpu_custom_call.1} parent=1 // pred_fallthru
      _
    // Predicated region
    $region18: #{tpu_custom_call.1} parent=1 // pred_check
      _
    $region19: #{tpu_custom_call.1} parent=1 // pred_check_branch
      %55 = sbr.rel (0) target = $region21
    $region20: #{tpu_custom_call.1} parent=1 // pred_region
      %56 = dma.done [#allocation4], 128
    $region21: #{tpu_custom_call.1} parent=1 // pred_fallthru
      _
    %57 = vsyncpa [#allocation3], 1
    %58 = vsyncpa [#allocation4], 1

</llo_original>
